<compile_context>
chip_gen: v5e
topology: v5e:2x2
jax: 0.10.0
libtpu: 0.0.40
codegen_flags: <defaults>
</compile_context>

<pallas_src>
import functools
import math

import jax
import jax.numpy as jnp
from jax.experimental import pallas as pl
from jax.experimental.pallas import tpu as pltpu

_LANE = 128


def _cdiv(a, b):
    return -(-a // b)


def _round_up(x, m):
    return _cdiv(x, m) * m


def _row_align(*dtypes):
    """Sublane alignment for row-tiled blocks: 8 (4B), 16 (2B), 32 (1B)."""
    return max(32 // jnp.dtype(d).itemsize for d in dtypes)


# --------------------------------------------------------------------------
# Capability probes (the only places where exceptions are swallowed)
# --------------------------------------------------------------------------
@functools.cache
def _vmem_budget_bytes():
    """Usable per-core VMEM with headroom; never above physical capacity."""
    try:
        cap = int(pltpu.get_tpu_info().vmem_capacity_bytes)
    except Exception:                       # capability probe only
        cap = 64 * 1024 * 1024              # v7x has the smallest VMEM per TC
    return max(cap - 8 * 1024 * 1024, cap * 3 // 4)


@functools.cache
def _single_buffered_weights_supported():
    """Probe whether pl.Buffered(1) (single-buffered grid-invariant inputs)
    lowers on this jax/libtpu combo.  Real kernels are built without try/except
    so genuine VMEM/shape errors are not masked."""
    def _copy(x_ref, o_ref):
        o_ref[...] = x_ref[...]
    try:
        out = pl.pallas_call(
            _copy,
            out_shape=jax.ShapeDtypeStruct((8, 128), jnp.float32),
            grid_spec=pltpu.PrefetchScalarGridSpec(
                num_scalar_prefetch=0, grid=(2,),
                in_specs=[pl.BlockSpec((8, 128), lambda i: (0, 0),
                                       pipeline_mode=pl.Buffered(1))],
                out_specs=pl.BlockSpec((8, 128), lambda i: (0, 0))),
        )(jnp.zeros((8, 128), jnp.float32))
        jax.block_until_ready(out)
        return True
    except Exception:                       # capability probe only
        return False


# --------------------------------------------------------------------------
# Fused kernels (weights VMEM-resident)
# --------------------------------------------------------------------------
def _fused_identity_kernel(x_ref, w1_ref, b1_ref, w2_ref, b2_ref, o_ref):
    """out = relu( relu(x@W1 + b1) @ W2 + b2 + x )  (identity skip)."""
    x = x_ref[...]                                   # original dtype
    y = jnp.dot(x.astype(w1_ref.dtype), w1_ref[...],
                preferred_element_type=jnp.float32) + b1_ref[...]
    y = jnp.maximum(y, 0.0)
    y = jnp.dot(y.astype(w2_ref.dtype), w2_ref[...],
                preferred_element_type=jnp.float32) + b2_ref[...]
    # residual add in f32 (x is NOT pre-truncated to bf16 on the host)
    o_ref[...] = jnp.maximum(y + x.astype(jnp.float32), 0.0).astype(o_ref.dtype)


def _fused_proj_kernel(x_ref, w1_ref, b1_ref, w2_ref, b2_ref,
                       w3_ref, b3_ref, o_ref):
    """out = relu( relu(x@W1 + b1) @ W2 + b2 + (x@W3 + b3) )  (projected skip)."""
    xc = x_ref[...].astype(w1_ref.dtype)
    y = jnp.dot(xc, w1_ref[...], preferred_element_type=jnp.float32) + b1_ref[...]
    y = jnp.maximum(y, 0.0)
    y = jnp.dot(y.astype(w2_ref.dtype), w2_ref[...],
                preferred_element_type=jnp.float32) + b2_ref[...]
    skip = jnp.dot(xc, w3_ref[...], preferred_element_type=jnp.float32) + b3_ref[...]
    o_ref[...] = jnp.maximum(y + skip, 0.0).astype(o_ref.dtype)


# --------------------------------------------------------------------------
# Blocked (wide-feature) kernels: K streamed, f32 VMEM accumulator
# --------------------------------------------------------------------------
def _mm_kernel(x_ref, w_ref, b_ref, o_ref, acc_ref, *, apply_relu):
    """o = [relu](x @ w + b), K-blocked reduction on the 'arbitrary' grid axis."""
    @pl.when(pl.program_id(2) == 0)
    def _init():
        acc_ref[...] = jnp.zeros_like(acc_ref)

    acc_ref[...] += jnp.dot(x_ref[...].astype(w_ref.dtype), w_ref[...],
                            preferred_element_type=jnp.float32)

    @pl.when(pl.program_id(2) == pl.num_programs(2) - 1)
    def _finish():
        y = acc_ref[...] + b_ref[...]
        if apply_relu:
            y = jnp.maximum(y, 0.0)
        o_ref[...] = y.astype(o_ref.dtype)


def _mm_skip_relu_kernel(x_ref, w_ref, b_ref, s_ref, o_ref, acc_ref):
    """o = relu(x @ w + b + skip), K-blocked with an f32 VMEM accumulator."""
    @pl.when(pl.program_id(2) == 0)
    def _init():
        acc_ref[...] = jnp.zeros_like(acc_ref)

    acc_ref[...] += jnp.dot(x_ref[...].astype(w_ref.dtype), w_ref[...],
                            preferred_element_type=jnp.float32)

    @pl.when(pl.program_id(2) == pl.num_programs(2) - 1)
    def _finish():
        y = acc_ref[...] + b_ref[...] + s_ref[...].astype(jnp.float32)
        o_ref[...] = jnp.maximum(y, 0.0).astype(o_ref.dtype)


def _blocked_matmul(x, w, b, skip=None, *, apply_relu, out_dtype,
                    bm, bn, bk, vmem_limit):
    m, k = x.shape
    n = w.shape[1]
    grid = (m // bm, n // bn, k // bk)
    in_specs = [pl.BlockSpec((bm, bk), lambda i, j, l: (i, l)),
                pl.BlockSpec((bk, bn), lambda i, j, l: (l, j)),
                pl.BlockSpec((1, bn), lambda i, j, l: (0, j))]
    args = [x, w, b]
    if skip is None:
        kernel = functools.partial(_mm_kernel, apply_relu=apply_relu)
    else:
        kernel = _mm_skip_relu_kernel
        in_specs.append(pl.BlockSpec((bm, bn), lambda i, j, l: (i, j)))
        args.append(skip)

    out_bytes = jnp.dtype(out_dtype).itemsize
    cost = pl.CostEstimate(
        flops=2 * m * n * k, transcendentals=0,
        bytes_accessed=(x.size * x.dtype.itemsize + w.size * w.dtype.itemsize
                        + b.size * 4 + m * n * out_bytes
                        + (skip.size * skip.dtype.itemsize if skip is not None else 0)))
    return pl.pallas_call(
        kernel,
        out_shape=jax.ShapeDtypeStruct((m, n), out_dtype),
        grid_spec=pltpu.PrefetchScalarGridSpec(
            num_scalar_prefetch=0, grid=grid,
            in_specs=in_specs,
            out_specs=pl.BlockSpec((bm, bn), lambda i, j, l: (i, j)),
            scratch_shapes=[pltpu.VMEM((bm, bn), jnp.float32)]),
        compiler_params=pltpu.CompilerParams(
            dimension_semantics=("parallel", "parallel", "arbitrary"),
            vmem_limit_bytes=vmem_limit),
        cost_estimate=cost,
    )(*args)


# --------------------------------------------------------------------------
# Tiling plans
# --------------------------------------------------------------------------
def _fused_row_bytes(c_in, c_out, x_bytes, out_bytes):
    # double-buffered x/out row tiles + in-kernel casts / f32 intermediates
    return 2 * (c_in * x_bytes + c_out * out_bytes) + 6 * c_in + 10 * c_out


def _fused_tile_cap(c_in, c_out, x_bytes, out_bytes, resident_weight_bytes, budget):
    """Largest row-tile cap fitting the VMEM budget with resident weights.
    None -> weights too large (or only a degenerate tile fits): use blocked path."""
    per_row = _fused_row_bytes(c_in, c_out, x_bytes, out_bytes)
    for cand in (1024, 512, 256, 128, 64):
        if resident_weight_bytes + cand * per_row <= budget:
            return cand
    return None


def _plan_rows(n, tile_cap, row_align):
    """(tile, padded_rows, grid_steps): tile <= cap, multiple of row_align,
    grid kept even (and >= 2 when rows allow) so v7x's two TensorCores split
    the parallel row axis evenly; tiny inputs are not inflated."""
    g = _cdiv(n, tile_cap)
    if n > row_align:
        g = max(g, 2)
    if g > 1 and g % 2:
        g += 1
    tile = min(tile_cap, _round_up(_cdiv(n, g), row_align))
    return tile, tile * g, g


def _pick_block(dim, cands=(512, 256, 128)):
    for c in cands:
        if dim % c == 0:
            return c
    return dim   # only reachable via force_mode on small dims


# --------------------------------------------------------------------------
# One-time parameter preparation (do NOT call per forward step)
# --------------------------------------------------------------------------
def prepare_params(params, *, compute_dtype=jnp.bfloat16, force_mode=None):
    """Cast weights to the MXU compute dtype, biases to f32 (1, out), decide
    fused vs blocked execution, and pad feature dims (blocked path only).
    Weights are stored (in, out) = torch weight^T."""
    w1 = jnp.asarray(params["w1"])
    c_in, c_out = w1.shape
    use_proj = "w3" in params
    if not use_proj:
        assert c_in == c_out, "identity skip requires in_channels == out_channels"

    wdt = jnp.dtype(compute_dtype)
    budget = _vmem_budget_bytes()
    single = _single_buffered_weights_supported()

    n_mats = 3 if use_proj else 2
    weight_bytes = ((c_in * c_out * (n_mats - 1) + c_out * c_out) * wdt.itemsize
                    + n_mats * c_out * 4)
    resident = weight_bytes * (1 if single else 2)
    # mode decision with worst-case 4-byte activations
    mode = "fused" if _fused_tile_cap(c_in, c_out, 4, 4, resident, budget) else "blocked"
    if force_mode is not None:
        mode = force_mode

    def wcast(name):
        return jnp.asarray(params[name]).astype(wdt)

    def bcast(name):
        return jnp.asarray(params[name]).reshape(1, -1).astype(jnp.float32)

    prepared = dict(mode=mode, use_proj=use_proj, c_in=c_in, c_out=c_out,
                    compute_dtype=wdt, budget=budget, single=single,
                    weight_bytes=weight_bytes)
    if mode == "fused":
        prepared.update(w1=wcast("w1"), b1=bcast("b1"),
                        w2=wcast("w2"), b2=bcast("b2"))
        if use_proj:
            prepared.update(w3=wcast("w3"), b3=bcast("b3"))
    else:
        # blocked path streams weight tiles; pad K/N to lane multiples ONCE here.
        cin_b, cout_b = _round_up(c_in, _LANE), _round_up(c_out, _LANE)

        def wpad(name, rows, cols):
            w = wcast(name)
            return jnp.pad(w, ((0, rows - w.shape[0]), (0, cols - w.shape[1])))

        def bpad(name, cols):
            b = bcast(name)
            return jnp.pad(b, ((0, 0), (0, cols - b.shape[1])))

        prepared.update(cin_b=cin_b, cout_b=cout_b,
                        w1=wpad("w1", cin_b, cout_b), b1=bpad("b1", cout_b),
                        w2=wpad("w2", cout_b, cout_b), b2=bpad("b2", cout_b))
        if use_proj:
            prepared.update(w3=wpad("w3", cin_b, cout_b), b3=bpad("b3", cout_b))
    return prepared


# --------------------------------------------------------------------------
# Forward
# --------------------------------------------------------------------------
def _fused_residual_call(*, use_proj, tile, grid_steps, n_p, c_in, c_out,
                         out_dtype, single_buffer, vmem_limit, cost):
    def wspec(shape):
        if single_buffer:
            # grid-invariant weights/biases: one VMEM buffer is enough
            return pl.BlockSpec(shape, lambda i: (0, 0),
                                pipeline_mode=pl.Buffered(1))
        return pl.BlockSpec(shape, lambda i: (0, 0))

    in_specs = [pl.BlockSpec((tile, c_in), lambda i: (i, 0)),   # x row tile
                wspec((c_in, c_out)), wspec((1, c_out)),        # W1, b1
                wspec((c_out, c_out)), wspec((1, c_out))]       # W2, b2
    kernel = _fused_identity_kernel
    if use_proj:
        in_specs += [wspec((c_in, c_out)), wspec((1, c_out))]   # W3, b3
        kernel = _fused_proj_kernel

    return pl.pallas_call(
        kernel,
        out_shape=jax.ShapeDtypeStruct((n_p, c_out), out_dtype),
        grid_spec=pltpu.PrefetchScalarGridSpec(
            num_scalar_prefetch=0, grid=(grid_steps,),
            in_specs=in_specs,
            out_specs=pl.BlockSpec((tile, c_out), lambda i: (i, 0))),
        compiler_params=pltpu.CompilerParams(
            dimension_semantics=("parallel",),
            vmem_limit_bytes=vmem_limit),
        cost_estimate=cost,
    )


def _forward_fused(x2d, p, out_dtype, tile_rows):
    n, c_in = x2d.shape
    c_out, use_proj = p["c_out"], p["use_proj"]
    x_bytes = x2d.dtype.itemsize
    out_bytes = out_dtype.itemsize
    resident = p["weight_bytes"] * (1 if p["single"] else 2)

    cap = tile_rows or _fused_tile_cap(c_in, c_out, x_bytes, out_bytes,
                                       resident, p["budget"]) or 64
    align = _row_align(x2d.dtype, out_dtype)
    tile, n_p, g = _plan_rows(n, cap, align)
    if n_p != n:   # ragged row tail only; no feature padding, no dtype repack
        x2d = jnp.pad(x2d, ((0, n_p - n), (0, 0)))

    flops = 2 * n_p * c_out * (c_in * (2 if use_proj else 1) + c_out)
    bytes_accessed = (n_p * c_in * x_bytes + p["weight_bytes"]
                      + n_p * c_out * out_bytes)
    cost = pl.CostEstimate(flops=flops, transcendentals=0,
                           bytes_accessed=bytes_accessed)
    est = resident + tile * _fused_row_bytes(c_in, c_out, x_bytes, out_bytes)
    vmem_limit = int(min(p["budget"], max(3 * est // 2, 32 * 1024 * 1024)))

    args = [x2d, p["w1"], p["b1"], p["w2"], p["b2"]]
    if use_proj:
        args += [p["w3"], p["b3"]]
    out2d = _fused_residual_call(
        use_proj=use_proj, tile=tile, grid_steps=g, n_p=n_p,
        c_in=c_in, c_out=c_out, out_dtype=out_dtype,
        single_buffer=p["single"], vmem_limit=vmem_limit, cost=cost)(*args)
    return out2d[:n] if n_p != n else out2d


def _forward_blocked(x2d, p, out_dtype, tile_rows):
    n, c_in = x2d.shape
    c_out, cin_b, cout_b = p["c_out"], p["cin_b"], p["cout_b"]
    cdt = p["compute_dtype"]
    if cin_b != c_in:                       # rare: wide-but-unaligned features
        x2d = jnp.pad(x2d, ((0, 0), (0, cin_b - c_in)))
    align = _row_align(x2d.dtype, out_dtype, cdt)
    tile, n_p, _ = _plan_rows(n, tile_rows or 256, align)
    if n_p != n:
        x2d = jnp.pad(x2d, ((0, n_p - n), (0, 0)))

    bn = _pick_block(cout_b)
    vmem_limit = p["budget"]

    # H = relu(X @ W1 + b1): W1 streamed block-by-block, never fully resident.
    h = _blocked_matmul(x2d, p["w1"], p["b1"], apply_relu=True, out_dtype=cdt,
                        bm=tile, bn=bn, bk=_pick_block(cin_b),
                        vmem_limit=vmem_limit)
    # skip = X @ W3 + b3 (projected) or X (identity, c_in == c_out).
    if p["use_proj"]:
        skip = _blocked_matmul(x2d, p["w3"], p["b3"], apply_relu=False,
                               out_dtype=jnp.float32, bm=tile, bn=bn,
                               bk=_pick_block(cin_b), vmem_limit=vmem_limit)
    else:
        skip = x2d
    # out = relu(H @ W2 + b2 + skip)
    out2d = _blocked_matmul(h, p["w2"], p["b2"], skip=skip, apply_relu=True,
                            out_dtype=out_dtype, bm=tile, bn=bn,
                            bk=_pick_block(cout_b), vmem_limit=vmem_limit)
    if n_p != n or cout_b != c_out:
        out2d = out2d[:n, :c_out]
    return out2d


def residual_forward(x, prepared, *, out_dtype=None, tile_rows=None):
    """Forward pass.  x: (..., in_features) in its original dtype (the cast to
    the compute dtype happens inside the kernel; the residual add stays f32).
    out_dtype defaults to x.dtype; pass jnp.bfloat16 to halve output traffic."""
    assert tile_rows is None or (tile_rows > 0 and tile_rows % 32 == 0)
    out_dtype = jnp.dtype(out_dtype or x.dtype)
    c_in, c_out = prepared["c_in"], prepared["c_out"]
    assert x.shape[-1] == c_in, "last axis must equal in_channels"
    lead = x.shape[:-1]
    n = math.prod(lead)
    x2d = x.reshape(n, c_in)
    if prepared["mode"] == "fused":
        out2d = _forward_fused(x2d, prepared, out_dtype, tile_rows)
    else:
        out2d = _forward_blocked(x2d, prepared, out_dtype, tile_rows)
    return out2d.reshape(*lead, c_out)


# --------------------------------------------------------------------------
# Params / reference
# --------------------------------------------------------------------------
def init_params(key, in_channels, out_channels, use_1x1conv=False,
                dtype=jnp.float32):
    """Deterministic synthetic init.  Weights stored (in, out) = torch W^T."""
    ks = jax.random.split(key, 6)
    s1 = 1.0 / jnp.sqrt(in_channels)
    s2 = 1.0 / jnp.sqrt(out_channels)
    params = {
        "w1": jax.random.uniform(ks[0], (in_channels, out_channels), dtype, -s1, s1),
        "b1": jax.random.uniform(ks[1], (1, out_channels), dtype, -s1, s1),
        "w2": jax.random.uniform(ks[2], (out_channels, out_channels), dtype, -s2, s2),
        "b2": jax.random.uniform(ks[3], (1, out_channels), dtype, -s2, s2),
    }
    if use_1x1conv:
        params["w3"] = jax.random.uniform(ks[4], (in_channels, out_channels), dtype, -s1, s1)
        params["b3"] = jax.random.uniform(ks[5], (1, out_channels), dtype, -s1, s1)
    return params


def residual_reference(x, params):
    """Pure-JAX reference mirroring the PyTorch forward (f32)."""
    y = jax.nn.relu(x @ params["w1"] + params["b1"][0])
    y = y @ params["w2"] + params["b2"][0]
    skip = x @ params["w3"] + params["b3"][0] if "w3" in params else x
    return jax.nn.relu(y + skip)


if __name__ == "__main__":
    key = jax.random.PRNGKey(0)
    k_x, k_p1, k_p2, k_xw, k_p3, k_p4 = jax.random.split(key, 6)

    batch, seq = 2, 8
    c_in, c_out = 32, 32
    x = jax.random.normal(k_x, (batch, seq, c_in), jnp.float32)

    # ---- fused path, identity skip (use_1x1conv=False) ----
    params = init_params(k_p1, c_in, c_out, use_1x1conv=False)
    ref = residual_reference(x, params)
    out = jax.block_until_ready(
        residual_forward(x, prepare_params(params, compute_dtype=jnp.float32)))
    assert out.shape == ref.shape and out.dtype == ref.dtype
    assert jnp.allclose(out, ref, atol=1e-5, rtol=1e-5), "f32 identity-skip mismatch"
    out = jax.block_until_ready(
        residual_forward(x, prepare_params(params, compute_dtype=jnp.bfloat16)))
    assert jnp.allclose(out, ref, atol=5e-2, rtol=5e-2), "bf16 identity-skip mismatch"

    # ---- fused path, projected skip (use_1x1conv=True, in != out) ----
    params2 = init_params(k_p2, c_in, 64, use_1x1conv=True)
    ref2 = residual_reference(x, params2)
    out2 = jax.block_until_ready(
        residual_forward(x, prepare_params(params2, compute_dtype=jnp.float32)))
    assert jnp.allclose(out2, ref2, atol=1e-5, rtol=1e-5), "f32 projected-skip mismatch"
    out2 = jax.block_until_ready(
        residual_forward(x, prepare_params(params2, compute_dtype=jnp.bfloat16)))
    assert jnp.allclose(out2, ref2, atol=5e-2, rtol=5e-2), "bf16 projected-skip mismatch"

    # ---- blocked (wide-feature) path, forced at small size for validation ----
    cw = 256
    xw = jax.random.normal(k_xw, (2, 64, cw), jnp.float32)
    params3 = init_params(k_p3, cw, cw, use_1x1conv=False)
    ref3 = residual_reference(xw, params3)
    out3 = jax.block_until_ready(residual_forward(
        xw, prepare_params(params3, compute_dtype=jnp.float32, force_mode="blocked")))
    assert jnp.allclose(out3, ref3, atol=1e-4, rtol=1e-4), "f32 blocked identity mismatch"
    params4 = init_params(k_p4, cw, cw, use_1x1conv=True)
    ref4 = residual_reference(xw, params4)
    out4 = jax.block_until_ready(residual_forward(
        xw, prepare_params(params4, compute_dtype=jnp.bfloat16, force_mode="blocked")))
    assert jnp.allclose(out4, ref4, atol=5e-2, rtol=5e-2), "bf16 blocked projected mismatch"

    print("KERNEL_OK")
</pallas_src>

<mosaic_0001>
module attributes {stable_mosaic.version = 11 : i64} {
  func.func @_copy(%arg0: i32, %arg1: memref<8x128xf32, #tpu.memory_space<vmem>>, %arg2: memref<8x128xf32, #tpu.memory_space<vmem>>) attributes {dimension_semantics = [#tpu.dimension_semantics<arbitrary>], iteration_bounds = array<i64: 2>, scalar_prefetch = 0 : i64, scratch_operands = 0 : i64, tpu.core_type = #tpu.core_type<tc>, window_params = [{pipeline_mode = #tpu.pipeline_mode<synchronous>, transform_indices = @transform_0, window_bounds = array<i64: 8, 128>}, {pipeline_mode = #tpu.pipeline_mode<synchronous>, transform_indices = @transform_1, window_bounds = array<i64: 8, 128>}]} {
    %c0 = arith.constant 0 : index
    %c0_0 = arith.constant 0 : index
    %0 = vector.load %arg1[%c0, %c0_0] : memref<8x128xf32, #tpu.memory_space<vmem>>, vector<8x128xf32>
    %c0_1 = arith.constant 0 : index
    %c0_2 = arith.constant 0 : index
    %1 = vector.load %arg2[%c0_1, %c0_2] : memref<8x128xf32, #tpu.memory_space<vmem>>, vector<8x128xf32>
    tpu.vector_store %arg2[%c0_1, %c0_2], %0 {strides = array<i32>} : memref<8x128xf32, #tpu.memory_space<vmem>>, vector<8x128xf32>,
    return
  }
  func.func @transform_0(%arg0: i32) -> (i32, i32) {
    %c0_i32 = arith.constant 0 : i32
    %c0_i32_0 = arith.constant 0 : i32
    %c0_i32_1 = arith.constant 0 : i32
    return %c0_i32, %c0_i32_0 : i32, i32
  }
  func.func @transform_1(%arg0: i32) -> (i32, i32) {
    %c0_i32 = arith.constant 0 : i32
    %c0_i32_0 = arith.constant 0 : i32
    %c0_i32_1 = arith.constant 0 : i32
    return %c0_i32, %c0_i32_0 : i32, i32
  }
}

module attributes {stable_mosaic.version = 11 : i64} {
  func.func @_fused_identity_kernel(%arg0: i32, %arg1: memref<8x32xf32, #tpu.memory_space<vmem>>, %arg2: memref<32x32xf32, #tpu.memory_space<vmem>>, %arg3: memref<1x32xf32, #tpu.memory_space<vmem>>, %arg4: memref<32x32xf32, #tpu.memory_space<vmem>>, %arg5: memref<1x32xf32, #tpu.memory_space<vmem>>, %arg6: memref<8x32xf32, #tpu.memory_space<vmem>>) attributes {dimension_semantics = [#tpu.dimension_semantics<parallel>], iteration_bounds = array<i64: 2>, scalar_prefetch = 0 : i64, scratch_operands = 0 : i64, tpu.core_type = #tpu.core_type<tc>, window_params = [{transform_indices = @transform_0, window_bounds = array<i64: 8, 32>}, {pipeline_mode = #tpu.pipeline_mode<synchronous>, transform_indices = @transform_1, window_bounds = array<i64: 32, 32>}, {pipeline_mode = #tpu.pipeline_mode<synchronous>, transform_indices = @transform_2, window_bounds = array<i64: 1, 32>}, {pipeline_mode = #tpu.pipeline_mode<synchronous>, transform_indices = @transform_3, window_bounds = array<i64: 32, 32>}, {pipeline_mode = #tpu.pipeline_mode<synchronous>, transform_indices = @transform_4, window_bounds = array<i64: 1, 32>}, {transform_indices = @transform_5, window_bounds = array<i64: 8, 32>}]} {
    %c0 = arith.constant 0 : index
    %c0_0 = arith.constant 0 : index
    %0 = vector.load %arg1[%c0, %c0_0] : memref<8x32xf32, #tpu.memory_space<vmem>>, vector<8x32xf32>
    %c0_1 = arith.constant 0 : index
    %c0_2 = arith.constant 0 : index
    %1 = vector.load %arg2[%c0_1, %c0_2] : memref<32x32xf32, #tpu.memory_space<vmem>>, vector<32x32xf32>
    %cst = arith.constant dense<0.000000e+00> : vector<8x32xf32>
    %2 = tpu.matmul %0, %1, %cst {dimension_numbers = #tpu.dot_dimension_numbers<[1], [0], [0], [1], [0, 0, 1, 1], [], []>} : vector<8x32xf32>, vector<32x32xf32>, vector<8x32xf32> -> vector<8x32xf32>
    %c0_3 = arith.constant 0 : index
    %c0_4 = arith.constant 0 : index
    %3 = vector.load %arg3[%c0_3, %c0_4] : memref<1x32xf32, #tpu.memory_space<vmem>>, vector<1x32xf32>
    %4 = vector.broadcast %3 : vector<1x32xf32> to vector<8x32xf32>
    %5 = arith.addf %2, %4 : vector<8x32xf32>
    %cst_5 = arith.constant 0.000000e+00 : f32
    %6 = vector.broadcast %cst_5 : f32 to vector<8x32xf32>
    %7 = arith.maximumf %5, %6 : vector<8x32xf32>
    %c0_6 = arith.constant 0 : index
    %c0_7 = arith.constant 0 : index
    %8 = vector.load %arg4[%c0_6, %c0_7] : memref<32x32xf32, #tpu.memory_space<vmem>>, vector<32x32xf32>
    %cst_8 = arith.constant dense<0.000000e+00> : vector<8x32xf32>
    %9 = tpu.matmul %7, %8, %cst_8 {dimension_numbers = #tpu.dot_dimension_numbers<[1], [0], [0], [1], [0, 0, 1, 1], [], []>} : vector<8x32xf32>, vector<32x32xf32>, vector<8x32xf32> -> vector<8x32xf32>
    %c0_9 = arith.constant 0 : index
    %c0_10 = arith.constant 0 : index
    %10 = vector.load %arg5[%c0_9, %c0_10] : memref<1x32xf32, #tpu.memory_space<vmem>>, vector<1x32xf32>
    %11 = vector.broadcast %10 : vector<1x32xf32> to vector<8x32xf32>
    %12 = arith.addf %9, %11 : vector<8x32xf32>
    %13 = arith.addf %12, %0 : vector<8x32xf32>
    %cst_11 = arith.constant 0.000000e+00 : f32
    %14 = vector.broadcast %cst_11 : f32 to vector<8x32xf32>
    %15 = arith.maximumf %13, %14 : vector<8x32xf32>
    %c0_12 = arith.constant 0 : index
    %c0_13 = arith.constant 0 : index
    %16 = vector.load %arg6[%c0_12, %c0_13] : memref<8x32xf32, #tpu.memory_space<vmem>>, vector<8x32xf32>
    tpu.vector_store %arg6[%c0_12, %c0_13], %15 {strides = array<i32>} : memref<8x32xf32, #tpu.memory_space<vmem>>, vector<8x32xf32>,
    return
  }
  func.func @transform_0(%arg0: i32) -> (i32, i32) {
    %c0_i32 = arith.constant 0 : i32
    %c0_i32_0 = arith.constant 0 : i32
    return %arg0, %c0_i32 : i32, i32
  }
  func.func @transform_1(%arg0: i32) -> (i32, i32) {
    %c0_i32 = arith.constant 0 : i32
    %c0_i32_0 = arith.constant 0 : i32
    %c0_i32_1 = arith.constant 0 : i32
    return %c0_i32, %c0_i32_0 : i32, i32
  }
  func.func @transform_2(%arg0: i32) -> (i32, i32) {
    %c0_i32 = arith.constant 0 : i32
    %c0_i32_0 = arith.constant 0 : i32
    %c0_i32_1 = arith.constant 0 : i32
    return %c0_i32, %c0_i32_0 : i32, i32
  }
  func.func @transform_3(%arg0: i32) -> (i32, i32) {
    %c0_i32 = arith.constant 0 : i32
    %c0_i32_0 = arith.constant 0 : i32
    %c0_i32_1 = arith.constant 0 : i32
    return %c0_i32, %c0_i32_0 : i32, i32
  }
  func.func @transform_4(%arg0: i32) -> (i32, i32) {
    %c0_i32 = arith.constant 0 : i32
    %c0_i32_0 = arith.constant 0 : i32
    %c0_i32_1 = arith.constant 0 : i32
    return %c0_i32, %c0_i32_0 : i32, i32
  }
  func.func @transform_5(%arg0: i32) -> (i32, i32) {
    %c0_i32 = arith.constant 0 : i32
    %c0_i32_0 = arith.constant 0 : i32
    return %arg0, %c0_i32 : i32, i32
  }
}

</mosaic_0001>

<llo_original>
// kernel: tpu_custom_call.1
$region0: #{tpu_custom_call.1}
  #allocation0 [shape = 'u32[]', space=smem, size = 0x4, offset = 0x4, fixed_abs, tag = 'smem constant byte address 0x4 - core index']
  #allocation1 [shape = 'u32[72,128]{1,0:T(1,128)}', space=vmem, size = 0x9000, scoped, tag = 'internal scratch']
  %s0 = inlined_call_operand.hbm [shape: f32[8,128], index: 0, kind: input, shape index: {}]
  %s1 = inlined_call_operand.hbm [shape: f32[8,128], index: 1, kind: output, shape index: {}]
  %s2 = sld [smem:[#allocation0]]
  $region41: #{tpu_custom_call.1} parent=0
    _
  %s4 = ssub.s32 1, %s2
  %s5 = scalar_select 0, %s4, %s2
  $region1: #{tpu_custom_call.1} parent=0
    #allocation2 [shape = 'u8[4096]{0}', space=vmem, size = 0x1000, scoped, tag = 'input window, operand 0, single buffered']
    #allocation3 [shape = 's32[2]{0}', space=sflag, size = 0x8, scoped, tag = 'scoped memory for tpu_custom_call.1']
    #allocation4 [shape = 's32[2]{0}', space=sflag, size = 0x8, scoped, tag = 'scoped memory for tpu_custom_call.1']
    #allocation5 [shape = 'u8[4096]{0}', space=vmem, size = 0x1000, scoped, tag = 'output window, operand 0, single buffered']
    %6 = vsyncpa [#allocation3], 0
    %7 = vsyncpa [#allocation4], 0
    loop: start=0, step=1, limit=4
    $region2: #{tpu_custom_call.1} parent=1 // loop_pre_header
      _
    $region3: #{tpu_custom_call.1} parent=1 // loop_header
      %s9 = sphi 0, %s13
      %p10 = scmp.ge.s32.totalorder %s9, 4
      %s17 = sphi 0, %s17
      %s19 = sphi 0, %s17
      %s20 = sphi 0, %s19
      %s34 = sphi 0, %s20
      %s38 = sphi 0, %s38
      %s40 = sphi 0, %s38
      %s41 = sphi 0, %s40
      %s55 = sphi 0, %s41
    $region4: #{tpu_custom_call.1} parent=1 // loop_header_branch
      %12 = sbr.rel (%p10) target = $region8
    $region5: #{tpu_custom_call.1} parent=1 // loop_body
      %s14 = ssub.s32 %s9, 1
      %s15 = ssub.s32 %s9, 2
      %s16 = sadd.s32 %s9, 1
      %s18 = sadd.s32 %s17, 1
      %p21 = scmp.eq.s32.totalorder %s9, 1
      %p22 = scmp.ne.s32.totalorder %s17, %s19
      %p23 = scmp.eq.s32.totalorder %s9, 0
      %p24 = por %p22, %p23
      %p25 = scmp.ne.s32.totalorder %s17, %s19
      %p26 = scmp.eq.s32.totalorder %s14, 1
      %p27 = por %p25, %p26
      %p28 = scmp.ne.s32.totalorder %s19, %s20
      %p29 = scmp.eq.s32.totalorder %s14, 0
      %p30 = por %p28, %p29
      %p31 = scmp.ne.s32.totalorder %s19, %s20
      %p32 = scmp.eq.s32.totalorder %s15, 1
      %p33 = por %p31, %p32
      %p35 = scmp.ne.s32.totalorder %s20, %s34
      %p36 = scmp.eq.s32.totalorder %s15, 0
      %p37 = por %p35, %p36
      %s39 = sadd.s32 %s38, 1
      %p42 = scmp.eq.s32.totalorder %s9, 1
      %p43 = scmp.ne.s32.totalorder %s38, %s40
      %p44 = scmp.eq.s32.totalorder %s9, 0
      %p45 = por %p43, %p44
      %p46 = scmp.ne.s32.totalorder %s38, %s40
      %p47 = scmp.eq.s32.totalorder %s14, 1
      %p48 = por %p46, %p47
      %p49 = scmp.ne.s32.totalorder %s40, %s41
      %p50 = scmp.eq.s32.totalorder %s14, 0
      %p51 = por %p49, %p50
      %p52 = scmp.ne.s32.totalorder %s40, %s41
      %p53 = scmp.eq.s32.totalorder %s15, 1
      %p54 = por %p52, %p53
      %p56 = scmp.ne.s32.totalorder %s41, %s55
      %p57 = scmp.eq.s32.totalorder %s15, 0
      %p58 = por %p56, %p57
      %p59 = scmp.le.s32.totalorder 1, %s9
      %p60 = scmp.lt.s32.totalorder %s9, 3
      %p61 = pnand %p59, %p60
      %p62 = pneg %p61
      // Predicated region
      $region9: #{tpu_custom_call.1} parent=5 // pred_check
        _
      $region10: #{tpu_custom_call.1} parent=5 // pred_check_branch
        %64 = sbr.rel (%p61) target = $region12
      $region11: #{tpu_custom_call.1} parent=5 // pred_region
        %s65 = ssub.s32 %s9, 1
        // Predicated region
        $region13: #{tpu_custom_call.1} parent=11 // pred_check
          %p66 = pneg %p30
        $region14: #{tpu_custom_call.1} parent=11 // pred_check_branch
          %68 = sbr.rel (%p66) target = $region16
        $region15: #{tpu_custom_call.1} parent=11 // pred_region
          %70 = vsyncadd [#allocation3], 0
          %s72 = sshll.u32 %s0, 4
          %s73 = int_to_ptr.hbm [resolvable:$true] %s72
          %s74 = sshll.u32 [#allocation2], 4
          %s75 = int_to_ptr.vmem [resolvable:$true] %s74
          %77 = dma.hbm_to_vmem [thread:$0]  %s73, 128, %s75, [#allocation3]
        $region16: #{tpu_custom_call.1} parent=11 // pred_fallthru
          _
      $region12: #{tpu_custom_call.1} parent=5 // pred_fallthru
        _
      %p78 = scmp.lt.s32.totalorder %s9, 2
      // Predicated region
      $region17: #{tpu_custom_call.1} parent=5 // pred_check
        %p79 = pneg %p78
      $region18: #{tpu_custom_call.1} parent=5 // pred_check_branch
        %81 = sbr.rel (%p79) target = $region20
      $region19: #{tpu_custom_call.1} parent=5 // pred_region
        _
      $region20: #{tpu_custom_call.1} parent=5 // pred_fallthru
        _
      %p82 = scmp.le.s32.totalorder 1, %s9
      %p83 = scmp.lt.s32.totalorder %s9, 3
      %p84 = pnand %p82, %p83
      %p85 = pneg %p84
      // Predicated region
      $region21: #{tpu_custom_call.1} parent=5 // pred_check
        _
      $region22: #{tpu_custom_call.1} parent=5 // pred_check_branch
        %87 = sbr.rel (%p84) target = $region24
      $region23: #{tpu_custom_call.1} parent=5 // pred_region
        %s88 = ssub.s32 %s9, 1
        // Predicated region
        $region25: #{tpu_custom_call.1} parent=23 // pred_check
          %p89 = pneg %p30
        $region26: #{tpu_custom_call.1} parent=23 // pred_check_branch
          %91 = sbr.rel (%p89) target = $region28
        $region27: #{tpu_custom_call.1} parent=23 // pred_region
          %93 = dma.done [#allocation3], 128
        $region28: #{tpu_custom_call.1} parent=23 // pred_fallthru
          _
        %p94 = pneg %p30
        %p95 = pneg %p27
        %p96 = pneg %p51
        %p97 = pneg %p48
        %v98 = vld [vmem:[#allocation2] sm:$0xff]
        %99 = vst [vmem:[#allocation5] sm:$0xff] %v98
        // Predicated region
        $region29: #{tpu_custom_call.1} parent=23 // pred_check
          %p100 = pneg %p48
        $region30: #{tpu_custom_call.1} parent=23 // pred_check_branch
          %102 = sbr.rel (%p100) target = $region32
        $region31: #{tpu_custom_call.1} parent=23 // pred_region
          %104 = vsyncadd [#allocation4], 0
          %s106 = sshll.u32 [#allocation5], 4
          %s107 = int_to_ptr.vmem [resolvable:$true] %s106
          %s108 = sshll.u32 %s1, 4
          %s109 = int_to_ptr.hbm [resolvable:$true] %s108
          %111 = dma.vmem_to_hbm [thread:$0]  %s107, 128, %s109, [#allocation4]
        $region32: #{tpu_custom_call.1} parent=23 // pred_fallthru
          _
        // Predicated region
        $region33: #{tpu_custom_call.1} parent=23 // pred_check
          %p112 = pneg %p48
        $region34: #{tpu_custom_call.1} parent=23 // pred_check_branch
          %114 = sbr.rel (%p112) target = $region36
        $region35: #{tpu_custom_call.1} parent=23 // pred_region
          %116 = dma.done [#allocation4], 128
        $region36: #{tpu_custom_call.1} parent=23 // pred_fallthru
          _
      $region24: #{tpu_custom_call.1} parent=5 // pred_fallthru
        _
      %p117 = scmp.le.s32.totalorder 2, %s9
      // Predicated region
      $region37: #{tpu_custom_call.1} parent=5 // pred_check
        %p118 = pneg %p117
      $region38: #{tpu_custom_call.1} parent=5 // pred_check_branch
        %120 = sbr.rel (%p118) target = $region40
      $region39: #{tpu_custom_call.1} parent=5 // pred_region
        %s121 = ssub.s32 %s9, 2
      $region40: #{tpu_custom_call.1} parent=5 // pred_fallthru
        _
    $region6: #{tpu_custom_call.1} parent=1 // loop_footer
      %s13 = sadd.s32 1, %s9
    $region7: #{tpu_custom_call.1} parent=1 // loop_footer_branch
      %8 = sbr.rel target = $region3
    $region8: #{tpu_custom_call.1} parent=1 // loop_exit
      _
    %122 = vsyncpa [#allocation3], 1
    %s123 = scalar_lea.sflag [#allocation3], 1
    %124 = vsyncpa %s123, 1
    %125 = vsyncpa [#allocation4], 1
    %s126 = scalar_lea.sflag [#allocation4], 1
    %127 = vsyncpa %s126, 1

// kernel: tpu_custom_call.1
$region0: #{tpu_custom_call.1}
  #allocation0 [shape = 'u32[]', space=smem, size = 0x4, offset = 0x4, fixed_abs, tag = 'smem constant byte address 0x4 - core index']
  #allocation1 [shape = 'u32[72,128]{1,0:T(1,128)}', space=vmem, size = 0x9000, scoped, tag = 'internal scratch']
  %s0 = inlined_call_operand.hbm [shape: f32[16,32], index: 0, kind: input, shape index: {}]
  %s1 = inlined_call_operand.hbm [shape: f32[32,32], index: 1, kind: input, shape index: {}]
  %s2 = inlined_call_operand.vmem [shape: f32[1,32], index: 2, kind: input, shape index: {}]
  %s3 = inlined_call_operand.hbm [shape: f32[32,32], index: 3, kind: input, shape index: {}]
  %s4 = inlined_call_operand.vmem [shape: f32[1,32], index: 4, kind: input, shape index: {}]
  %s5 = inlined_call_operand.hbm [shape: f32[16,32], index: 5, kind: output, shape index: {}]
  %s6 = sld [smem:[#allocation0]]
  $region65: #{tpu_custom_call.1} parent=0
    _
  %s8 = ssub.s32 1, %s6
  %s9 = scalar_select 0, %s8, %s6
  $region1: #{tpu_custom_call.1} parent=0
    #allocation2 [shape = 'u8[8192]{0}', space=vmem, size = 0x2000, scoped, tag = 'input window, operand 0']
    #allocation3 [shape = 's32[2]{0}', space=sflag, size = 0x8, scoped, tag = 'scoped memory for tpu_custom_call.1']
    #allocation4 [shape = 's32[2]{0}', space=sflag, size = 0x8, scoped, tag = 'scoped memory for tpu_custom_call.1']
    #allocation5 [shape = 'u8[16384]{0}', space=vmem, size = 0x4000, scoped, tag = 'input window, operand 1, single buffered']
    #allocation6 [shape = 's32[1]{0}', space=sflag, size = 0x4, scoped, tag = 'scoped memory for tpu_custom_call.1']
    #allocation7 [shape = 'u8[16384]{0}', space=vmem, size = 0x4000, scoped, tag = 'input window, operand 3, single buffered']
    #allocation8 [shape = 'u8[8192]{0}', space=vmem, size = 0x2000, scoped, tag = 'output window, operand 0']
    %10 = vsyncpa [#allocation3], 0
    %s11 = scalar_lea.sflag [#allocation3], 1
    %12 = vsyncpa %s11, 0
    %13 = vsyncpa [#allocation6], 0
    %14 = vsyncpa [#allocation4], 0
    %s15 = scalar_lea.sflag [#allocation4], 1
    %16 = vsyncpa %s15, 0
    loop: start=0, step=1, limit=4
    $region2: #{tpu_custom_call.1} parent=1 // loop_pre_header
      _
    $region3: #{tpu_custom_call.1} parent=1 // loop_header
      %s18 = sphi 0, %s22
      %p19 = scmp.ge.s32.totalorder %s18, 4
      %s28 = sphi 0, %s30
      %s31 = sphi 0, %s28
      %s32 = sphi 0, %s31
      %s48 = sphi 0, %s32
      %s52 = sphi 0, %s52
      %s54 = sphi 0, %s52
      %s55 = sphi 0, %s54
      %s69 = sphi 0, %s55
      %s73 = sphi 0, %s73
      %s75 = sphi 0, %s73
      %s76 = sphi 0, %s75
      %s90 = sphi 0, %s76
      %s94 = sphi 0, %s94
      %s96 = sphi 0, %s94
      %s97 = sphi 0, %s96
      %s111 = sphi 0, %s97
      %s115 = sphi 0, %s115
      %s117 = sphi 0, %s115
      %s118 = sphi 0, %s117
      %s132 = sphi 0, %s118
      %s138 = sphi 0, %s140
      %s141 = sphi 0, %s138
      %s142 = sphi 0, %s141
      %s158 = sphi 0, %s142
    $region4: #{tpu_custom_call.1} parent=1 // loop_header_branch
      %21 = sbr.rel (%p19) target = $region8
    $region5: #{tpu_custom_call.1} parent=1 // loop_body
      %s23 = ssub.s32 %s18, 1
      %s24 = ssub.s32 %s18, 2
      %s25 = sadd.s32 %s18, 1
      %s26 = ssub.s32 %s18, %s25
      %p27 = scmp.eq.s32.totalorder %s26, 0
      %s29 = sadd.s32 %s28, 1
      %s30 = scalar_select %p27, %s28, %s29
      %p33 = pneg %p27
      %p34 = scmp.eq.s32.totalorder %s18, 1
      %p35 = por %p33, %p34
      %p36 = scmp.ne.s32.totalorder %s28, %s31
      %p37 = scmp.eq.s32.totalorder %s18, 0
      %p38 = por %p36, %p37
      %p39 = scmp.ne.s32.totalorder %s28, %s31
      %p40 = scmp.eq.s32.totalorder %s23, 1
      %p41 = por %p39, %p40
      %p42 = scmp.ne.s32.totalorder %s31, %s32
      %p43 = scmp.eq.s32.totalorder %s23, 0
      %p44 = por %p42, %p43
      %p45 = scmp.ne.s32.totalorder %s31, %s32
      %p46 = scmp.eq.s32.totalorder %s24, 1
      %p47 = por %p45, %p46
      %p49 = scmp.ne.s32.totalorder %s32, %s48
      %p50 = scmp.eq.s32.totalorder %s24, 0
      %p51 = por %p49, %p50
      %s53 = sadd.s32 %s52, 1
      %p56 = scmp.eq.s32.totalorder %s18, 1
      %p57 = scmp.ne.s32.totalorder %s52, %s54
      %p58 = scmp.eq.s32.totalorder %s18, 0
      %p59 = por %p57, %p58
      %p60 = scmp.ne.s32.totalorder %s52, %s54
      %p61 = scmp.eq.s32.totalorder %s23, 1
      %p62 = por %p60, %p61
      %p63 = scmp.ne.s32.totalorder %s54, %s55
      %p64 = scmp.eq.s32.totalorder %s23, 0
      %p65 = por %p63, %p64
      %p66 = scmp.ne.s32.totalorder %s54, %s55
      %p67 = scmp.eq.s32.totalorder %s24, 1
      %p68 = por %p66, %p67
      %p70 = scmp.ne.s32.totalorder %s55, %s69
      %p71 = scmp.eq.s32.totalorder %s24, 0
      %p72 = por %p70, %p71
      %s74 = sadd.s32 %s73, 1
      %p77 = scmp.eq.s32.totalorder %s18, 1
      %p78 = scmp.ne.s32.totalorder %s73, %s75
      %p79 = scmp.eq.s32.totalorder %s18, 0
      %p80 = por %p78, %p79
      %p81 = scmp.ne.s32.totalorder %s73, %s75
      %p82 = scmp.eq.s32.totalorder %s23, 1
      %p83 = por %p81, %p82
      %p84 = scmp.ne.s32.totalorder %s75, %s76
      %p85 = scmp.eq.s32.totalorder %s23, 0
      %p86 = por %p84, %p85
      %p87 = scmp.ne.s32.totalorder %s75, %s76
      %p88 = scmp.eq.s32.totalorder %s24, 1
      %p89 = por %p87, %p88
      %p91 = scmp.ne.s32.totalorder %s76, %s90
      %p92 = scmp.eq.s32.totalorder %s24, 0
      %p93 = por %p91, %p92
      %s95 = sadd.s32 %s94, 1
      %p98 = scmp.eq.s32.totalorder %s18, 1
      %p99 = scmp.ne.s32.totalorder %s94, %s96
      %p100 = scmp.eq.s32.totalorder %s18, 0
      %p101 = por %p99, %p100
      %p102 = scmp.ne.s32.totalorder %s94, %s96
      %p103 = scmp.eq.s32.totalorder %s23, 1
      %p104 = por %p102, %p103
      %p105 = scmp.ne.s32.totalorder %s96, %s97
      %p106 = scmp.eq.s32.totalorder %s23, 0
      %p107 = por %p105, %p106
      %p108 = scmp.ne.s32.totalorder %s96, %s97
      %p109 = scmp.eq.s32.totalorder %s24, 1
      %p110 = por %p108, %p109
      %p112 = scmp.ne.s32.totalorder %s97, %s111
      %p113 = scmp.eq.s32.totalorder %s24, 0
      %p114 = por %p112, %p113
      %s116 = sadd.s32 %s115, 1
      %p119 = scmp.eq.s32.totalorder %s18, 1
      %p120 = scmp.ne.s32.totalorder %s115, %s117
      %p121 = scmp.eq.s32.totalorder %s18, 0
      %p122 = por %p120, %p121
      %p123 = scmp.ne.s32.totalorder %s115, %s117
      %p124 = scmp.eq.s32.totalorder %s23, 1
      %p125 = por %p123, %p124
      %p126 = scmp.ne.s32.totalorder %s117, %s118
      %p127 = scmp.eq.s32.totalorder %s23, 0
      %p128 = por %p126, %p127
      %p129 = scmp.ne.s32.totalorder %s117, %s118
      %p130 = scmp.eq.s32.totalorder %s24, 1
      %p131 = por %p129, %p130
      %p133 = scmp.ne.s32.totalorder %s118, %s132
      %p134 = scmp.eq.s32.totalorder %s24, 0
      %p135 = por %p133, %p134
      %s136 = ssub.s32 %s18, %s25
      %p137 = scmp.eq.s32.totalorder %s136, 0
      %s139 = sadd.s32 %s138, 1
      %s140 = scalar_select %p137, %s138, %s139
      %p143 = pneg %p137
      %p144 = scmp.eq.s32.totalorder %s18, 1
      %p145 = por %p143, %p144
      %p146 = scmp.ne.s32.totalorder %s138, %s141
      %p147 = scmp.eq.s32.totalorder %s18, 0
      %p148 = por %p146, %p147
      %p149 = scmp.ne.s32.totalorder %s138, %s141
      %p150 = scmp.eq.s32.totalorder %s23, 1
      %p151 = por %p149, %p150
      %p152 = scmp.ne.s32.totalorder %s141, %s142
      %p153 = scmp.eq.s32.totalorder %s23, 0
      %p154 = por %p152, %p153
      %p155 = scmp.ne.s32.totalorder %s141, %s142
      %p156 = scmp.eq.s32.totalorder %s24, 1
      %p157 = por %p155, %p156
      %p159 = scmp.ne.s32.totalorder %s142, %s158
      %p160 = scmp.eq.s32.totalorder %s24, 0
      %p161 = por %p159, %p160
      %p162 = scmp.le.s32.totalorder 1, %s18
      %p163 = scmp.lt.s32.totalorder %s18, 3
      %p164 = pnand %p162, %p163
      %p165 = pneg %p164
      // Predicated region
      $region9: #{tpu_custom_call.1} parent=5 // pred_check
        _
      $region10: #{tpu_custom_call.1} parent=5 // pred_check_branch
        %167 = sbr.rel (%p164) target = $region12
      $region11: #{tpu_custom_call.1} parent=5 // pred_region
        %s168 = ssub.s32 %s18, 1
        // Predicated region
        $region13: #{tpu_custom_call.1} parent=11 // pred_check
          %p169 = pneg %p65
        $region14: #{tpu_custom_call.1} parent=11 // pred_check_branch
          %171 = sbr.rel (%p169) target = $region16
        $region15: #{tpu_custom_call.1} parent=11 // pred_region
          %173 = vsyncadd [#allocation6], 0
          %s174 = sshll.u32 %s1, 4
          %s175 = int_to_ptr.hbm [resolvable:$true] %s174
          %s176 = sshll.u32 [#allocation5], 4
          %s177 = int_to_ptr.vmem [resolvable:$true] %s176
          %182 = dma.hbm_to_vmem [thread:$0]  %s175, 512, %s177, [#allocation6], 128, 128, 8
        $region16: #{tpu_custom_call.1} parent=11 // pred_fallthru
          _
        // Predicated region
        $region17: #{tpu_custom_call.1} parent=11 // pred_check
          %p183 = pneg %p86
        $region18: #{tpu_custom_call.1} parent=11 // pred_check_branch
          %185 = sbr.rel (%p183) target = $region20
        $region19: #{tpu_custom_call.1} parent=11 // pred_region
          _
        $region20: #{tpu_custom_call.1} parent=11 // pred_fallthru
          _
        // Predicated region
        $region21: #{tpu_custom_call.1} parent=11 // pred_check
          %p186 = pneg %p107
        $region22: #{tpu_custom_call.1} parent=11 // pred_check_branch
          %188 = sbr.rel (%p186) target = $region24
        $region23: #{tpu_custom_call.1} parent=11 // pred_region
          %190 = vsyncadd [#allocation6], 0
          %s191 = sshll.u32 %s3, 4
          %s192 = int_to_ptr.hbm [resolvable:$true] %s191
          %s193 = sshll.u32 [#allocation7], 4
          %s194 = int_to_ptr.vmem [resolvable:$true] %s193
          %199 = dma.hbm_to_vmem [thread:$0]  %s192, 512, %s194, [#allocation6], 128, 128, 8
        $region24: #{tpu_custom_call.1} parent=11 // pred_fallthru
          _
        // Predicated region
        $region25: #{tpu_custom_call.1} parent=11 // pred_check
          %p200 = pneg %p128
        $region26: #{tpu_custom_call.1} parent=11 // pred_check_branch
          %202 = sbr.rel (%p200) target = $region28
        $region27: #{tpu_custom_call.1} parent=11 // pred_region
          _
        $region28: #{tpu_custom_call.1} parent=11 // pred_fallthru
          _
      $region12: #{tpu_custom_call.1} parent=5 // pred_fallthru
        _
      %p203 = scmp.lt.s32.totalorder %s18, 2
      // Predicated region
      $region29: #{tpu_custom_call.1} parent=5 // pred_check
        %p204 = pneg %p203
      $region30: #{tpu_custom_call.1} parent=5 // pred_check_branch
        %206 = sbr.rel (%p204) target = $region32
      $region31: #{tpu_custom_call.1} parent=5 // pred_region
        // Predicated region
        $region33: #{tpu_custom_call.1} parent=31 // pred_check
          %p207 = pneg %p38
        $region34: #{tpu_custom_call.1} parent=31 // pred_check_branch
          %209 = sbr.rel (%p207) target = $region36
        $region35: #{tpu_custom_call.1} parent=31 // pred_region
          %s210 = sand.u32 %s28, 1
          %s211 = scalar_lea.sflag [#allocation3], %s210
          %s212 = sand.u32 %s28, 1
          %s213 = smul.addr %s212, 8
          %s214 = scalar_lea.vmem [#allocation2], %s213
          %216 = vsyncadd %s211, 0
          %s217 = smul.addr %s18, 8
          %s218 = scalar_lea.hbm %s0, %s217
          %s220 = sshll.u32 %s218, 4
          %s221 = int_to_ptr.hbm [resolvable:$true] %s220
          %s222 = sshll.u32 %s214, 4
          %s223 = int_to_ptr.vmem [resolvable:$true] %s222
          %225 = dma.hbm_to_vmem [thread:$0]  %s221, 128, %s223, %s211
        $region36: #{tpu_custom_call.1} parent=31 // pred_fallthru
          _
      $region32: #{tpu_custom_call.1} parent=5 // pred_fallthru
        _
      %p226 = scmp.le.s32.totalorder 1, %s18
      %p227 = scmp.lt.s32.totalorder %s18, 3
      %p228 = pnand %p226, %p227
      %p229 = pneg %p228
      // Predicated region
      $region37: #{tpu_custom_call.1} parent=5 // pred_check
        _
      $region38: #{tpu_custom_call.1} parent=5 // pred_check_branch
        %231 = sbr.rel (%p228) target = $region40
      $region39: #{tpu_custom_call.1} parent=5 // pred_region
        %s232 = ssub.s32 %s18, 1
        %s233 = sand.u32 %s31, 1
        %s234 = scalar_lea.sflag [#allocation3], %s233
        %s235 = sand.u32 %s31, 1
        %s236 = smul.addr %s235, 8
        %s237 = scalar_lea.vmem [#allocation2], %s236
        // Predicated region
        $region41: #{tpu_custom_call.1} parent=39 // pred_check
          %p238 = pneg %p44
        $region42: #{tpu_custom_call.1} parent=39 // pred_check_branch
          %240 = sbr.rel (%p238) target = $region44
        $region43: #{tpu_custom_call.1} parent=39 // pred_region
          %242 = dma.done %s234, 128
        $region44: #{tpu_custom_call.1} parent=39 // pred_fallthru
          _
        // Predicated region
        $region45: #{tpu_custom_call.1} parent=39 // pred_check
          %p243 = pneg %p65
        $region46: #{tpu_custom_call.1} parent=39 // pred_check_branch
          %245 = sbr.rel (%p243) target = $region48
        $region47: #{tpu_custom_call.1} parent=39 // pred_region
          %247 = dma.done [#allocation6], 512
        $region48: #{tpu_custom_call.1} parent=39 // pred_fallthru
          _
        // Predicated region
        $region49: #{tpu_custom_call.1} parent=39 // pred_check
          %p248 = pneg %p107
        $region50: #{tpu_custom_call.1} parent=39 // pred_check_branch
          %250 = sbr.rel (%p248) target = $region52
        $region51: #{tpu_custom_call.1} parent=39 // pred_region
          %252 = dma.done [#allocation6], 512
        $region52: #{tpu_custom_call.1} parent=39 // pred_fallthru
          _
        %s253 = sand.u32 %s31, 1
        %s254 = scalar_lea.sflag [#allocation3], %s253
        %s255 = sand.u32 %s31, 1
        %s256 = smul.addr %s255, 8
        %s257 = scalar_lea.vmem [#allocation2], %s256
        %p258 = pneg %p44
        %p259 = pneg %p41
        %p260 = pneg %p65
        %p261 = pneg %p62
        %p262 = pneg %p86
        %p263 = pneg %p83
        %p264 = pneg %p107
        %p265 = pneg %p104
        %p266 = pneg %p128
        %p267 = pneg %p125
        %p268 = pneg %p154
        %p269 = pneg %p151
        %s270 = sand.u32 %s141, 1
        %s271 = scalar_lea.sflag [#allocation4], %s270
        %s272 = sand.u32 %s141, 1
        %s273 = smul.addr %s272, 8
        %s274 = scalar_lea.vmem [#allocation8], %s273
        %v275 = vld [vmem:[%s237] sm:$0xff]
        %v276 = vld [vmem:[#allocation5] sm:$0xff]
        %v277 = vld [vmem:[#allocation5 + $0x8] sm:$0xff]
        %v278 = vld [vmem:[#allocation5 + $0x10] sm:$0xff]
        %v279 = vld [vmem:[#allocation5 + $0x18] sm:$0xff]
        %v280 = vld [vmem:[%s2] sm:$0x1]
        %v282 = vperm.slane %v280, 0
        %vm284 = vcmask 261120
        %v286 = vsel %vm284, %v275, 0
        %288 = vmatpush.msra.mxu0 0.0
        %289 = vmatpush.msra.mxu0 0.0
        %290 = vmatpush.msra.mxu0 0.0
        %291 = vmatpush.msra.mxu0 0.0
        %292 = vmatpush.msra.mxu0 0.0
        %293 = vmatpush.msra.mxu0 0.0
        %294 = vmatpush.msra.mxu0 0.0
        %295 = vmatpush.msra.mxu0 0.0
        %296 = vmatpush.msra.mxu0 0.0
        %297 = vmatpush.msra.mxu0 0.0
        %298 = vmatpush.msra.mxu0 0.0
        %299 = vmatpush.msra.mxu0 0.0
        %300 = vmatpush.msra.mxu0 %v279
        %301 = vmatpush.msra.mxu0 %v278
        %302 = vmatpush.msra.mxu0 %v277
        %303 = vmatpush.msra.mxu0 %v276
        %304 = vmatmul.f32.gmra.mxu0 %v286
        %v305 = vpop.f32.mrf.mxu0
        %v306 = vadd.f32 %v282, %v305
        %307 = vdwg.mxu0
        %v308 = vmax.f32 %v306, 0.0
        %v309 = vld [vmem:[#allocation7] sm:$0xff]
        %v310 = vld [vmem:[#allocation7 + $0x8] sm:$0xff]
        %v311 = vld [vmem:[#allocation7 + $0x10] sm:$0xff]
        %v312 = vld [vmem:[#allocation7 + $0x18] sm:$0xff]
        %v313 = vld [vmem:[%s4] sm:$0x1]
        %v315 = vperm.slane %v313, 0
        %v318 = vsel %vm284, %v308, 0
        %320 = vmatpush.msra.mxu0 0.0
        %321 = vmatpush.msra.mxu0 0.0
        %322 = vmatpush.msra.mxu0 0.0
        %323 = vmatpush.msra.mxu0 0.0
        %324 = vmatpush.msra.mxu0 0.0
        %325 = vmatpush.msra.mxu0 0.0
        %326 = vmatpush.msra.mxu0 0.0
        %327 = vmatpush.msra.mxu0 0.0
        %328 = vmatpush.msra.mxu0 0.0
        %329 = vmatpush.msra.mxu0 0.0
        %330 = vmatpush.msra.mxu0 0.0
        %331 = vmatpush.msra.mxu0 0.0
        %332 = vmatpush.msra.mxu0 %v312
        %333 = vmatpush.msra.mxu0 %v311
        %334 = vmatpush.msra.mxu0 %v310
        %335 = vmatpush.msra.mxu0 %v309
        %336 = vmatmul.f32.gmra.mxu0 %v318
        %v337 = vpop.f32.mrf.mxu0
        %v338 = vadd.f32 %v315, %v337
        %339 = vdwg.mxu0
        %v340 = vadd.f32 %v338, %v275
        %v341 = vmax.f32 %v340, 0.0
        %342 = vst.msk [vmem:[%s274] sm:$0xff] %vm284, %v341
        %s343 = sand.u32 %s141, 1
        %s344 = scalar_lea.sflag [#allocation4], %s343
        %s345 = sand.u32 %s141, 1
        %s346 = smul.addr %s345, 8
        %s347 = scalar_lea.vmem [#allocation8], %s346
        // Predicated region
        $region53: #{tpu_custom_call.1} parent=39 // pred_check
          %p348 = pneg %p151
        $region54: #{tpu_custom_call.1} parent=39 // pred_check_branch
          %350 = sbr.rel (%p348) target = $region56
        $region55: #{tpu_custom_call.1} parent=39 // pred_region
          %352 = vsyncadd %s344, 0
          %s353 = smul.addr %s23, 8
          %s354 = scalar_lea.hbm %s5, %s353
          %s356 = sshll.u32 %s347, 4
          %s357 = int_to_ptr.vmem [resolvable:$true] %s356
          %s358 = sshll.u32 %s354, 4
          %s359 = int_to_ptr.hbm [resolvable:$true] %s358
          %361 = dma.vmem_to_hbm [thread:$0]  %s357, 128, %s359, %s344
        $region56: #{tpu_custom_call.1} parent=39 // pred_fallthru
          _
      $region40: #{tpu_custom_call.1} parent=5 // pred_fallthru
        _
      %p362 = scmp.le.s32.totalorder 2, %s18
      // Predicated region
      $region57: #{tpu_custom_call.1} parent=5 // pred_check
        %p363 = pneg %p362
      $region58: #{tpu_custom_call.1} parent=5 // pred_check_branch
        %365 = sbr.rel (%p363) target = $region60
      $region59: #{tpu_custom_call.1} parent=5 // pred_region
        %s366 = ssub.s32 %s18, 2
        // Predicated region
        $region61: #{tpu_custom_call.1} parent=59 // pred_check
          %p367 = pneg %p157
        $region62: #{tpu_custom_call.1} parent=59 // pred_check_branch
          %369 = sbr.rel (%p367) target = $region64
        $region63: #{tpu_custom_call.1} parent=59 // pred_region
          %s370 = sand.u32 %s142, 1
          %s371 = scalar_lea.sflag [#allocation4], %s370
          %s372 = sand.u32 %s142, 1
          %s373 = smul.addr %s372, 8
          %s374 = scalar_lea.vmem [#allocation8], %s373
          %376 = dma.done %s371, 128
        $region64: #{tpu_custom_call.1} parent=59 // pred_fallthru
          _
      $region60: #{tpu_custom_call.1} parent=5 // pred_fallthru
        _
    $region6: #{tpu_custom_call.1} parent=1 // loop_footer
      %s22 = sadd.s32 1, %s18
    $region7: #{tpu_custom_call.1} parent=1 // loop_footer_branch
      %17 = sbr.rel target = $region3
    $region8: #{tpu_custom_call.1} parent=1 // loop_exit
      _
    %377 = vsyncpa [#allocation3], 1
    %s378 = scalar_lea.sflag [#allocation3], 1
    %379 = vsyncpa %s378, 1
    %380 = vsyncpa [#allocation6], 1
    %381 = vsyncpa [#allocation4], 1
    %s382 = scalar_lea.sflag [#allocation4], 1
    %383 = vsyncpa %s382, 1

</llo_original>
